<compile_context>
chip_gen: v7x
topology: tpu7x:2x2x1
jax: 0.10.0
libtpu: 0.0.40
codegen_flags: <defaults>
</compile_context>

<pallas_src>
import jax
import jax.numpy as jnp
import numpy as np
from jax.experimental import pallas as pl
from jax.experimental.pallas import tpu as pltpu

NEG_SLOPE = 0.2  # LeakyReLU slope used in SKFF


def _cdiv(a, b):
    return -(-a // b)


def _round_up(a, b):
    return _cdiv(a, b) * b


def _vmem_limit_bytes():
    """Scoped-VMEM limit from physical capacity (v5e/v6e: 128 MiB -> 64 MiB,
    v7x: 64 MiB -> 40 MiB). Conservative 64 MiB assumption if query fails."""
    cap = 64 << 20
    try:
        cap = int(pltpu.get_tpu_info().vmem_capacity_bytes)
    except Exception:
        pass
    return max(32 << 20, min(cap * 5 // 8, 64 << 20))


def _fold_factor(C, HW, itemsize):
    """Fold spatial into sublanes when C under-fills the sublane pack width."""
    pack = 8 * max(1, 4 // max(1, itemsize))   # 8 (f32) / 16 (bf16) / 32 (int8)
    if C >= pack or pack % C != 0:
        return 1
    s = pack // C
    while s > 1 and HW % s != 0:
        s //= 2
    return s


def _plan_tiles(hw, row_bytes, target_bytes):
    """Lane tile (multiple of 128) near target_bytes; padded HW = n_tiles*tile."""
    hw128 = _round_up(max(hw, 1), 128)
    t_max = max(128, (target_bytes // max(row_bytes, 1)) // 128 * 128)
    n_tiles = _cdiv(hw128, t_max)
    thw = _round_up(_cdiv(hw128, n_tiles), 128)
    return thw, n_tiles, thw * n_tiles


def _make_pool_kernel(height):
    """Pass 1: per-(batch, core-split) channel sums, accumulated over HW tiles."""
    def kernel(*refs):
        x_refs = refs[:height]          # each (Cf, thw)
        sum_ref = refs[height]          # (Cf, 1) f32, resident across tile axis

        u = x_refs[0][...].astype(jnp.float32)
        for h in range(1, height):
            u = u + x_refs[h][...].astype(jnp.float32)
        part = jnp.sum(u, axis=-1, keepdims=True)        # (Cf, 1) lane reduce

        @pl.when(pl.program_id(2) == 0)
        def _():
            sum_ref[...] = part

        @pl.when(pl.program_id(2) != 0)
        def _():
            sum_ref[...] = sum_ref[...] + part

    return kernel


def _make_weighted_sum_kernel(height):
    """Pass 2: out = sum_h x_h * attn_h with precomputed f32 attention."""
    def kernel(*refs):
        attn_ref = refs[0]              # (height, Cf, 1) f32
        x_refs = refs[1:1 + height]     # each (Cf, thw), input dtype
        o_ref = refs[1 + height]        # (Cf, thw)

        acc = x_refs[0][...] * attn_ref[0]               # promotes to f32
        for h in range(1, height):
            acc = acc + x_refs[h][...] * attn_ref[h]
        o_ref[...] = acc.astype(o_ref.dtype)

    return kernel


def skff_forward(inp_feats, w_du, w_fcs):
    """SKFF forward. inp_feats: list of NCHW arrays [B, C, H, W] (len = height)."""
    height = len(inp_feats)
    B, C, H, W = inp_feats[0].shape
    HW = H * W
    d = w_du.shape[0]
    x_dtype = inp_feats[0].dtype
    itemsize = jnp.dtype(x_dtype).itemsize

    # ---------------- layout / tiling plan ----------------------------------
    s_fold = _fold_factor(C, HW, itemsize)
    Cf = C * s_fold
    hw_f = HW // s_fold

    vmem_limit = _vmem_limit_bytes()
    # (height inputs + 1 output) double-buffered blocks (+ margin) within budget.
    blk_target = max(256 << 10, min(2 << 20, vmem_limit // (2 * (height + 1) + 2)))
    thw, n_tiles, hw_pad = _plan_tiles(hw_f, Cf * itemsize, blk_target)

    # Flattened / sublane-folded views; pure row-major reshapes (no transpose).
    xs = [f.reshape(B, Cf, hw_f) for f in inp_feats]
    if hw_pad != hw_f:
        xs = [jnp.pad(x, ((0, 0), (0, 0), (0, hw_pad - hw_f))) for x in xs]

    # Split the HW-tile axis two ways for pass 1 (keeps both v7x TCs busy).
    n_par = 2 if (n_tiles % 2 == 0 and n_tiles >= 2) else 1
    n_inner = n_tiles // n_par

    # ---------------- pass 1: per-batch channel sums (pool numerator) -------
    def x_map1(b, p, t):
        return (b, 0, p * n_inner + t)

    pooled = pl.pallas_call(
        _make_pool_kernel(height),
        out_shape=jax.ShapeDtypeStruct((B, n_par, Cf, 1), jnp.float32),
        grid_spec=pltpu.PrefetchScalarGridSpec(
            num_scalar_prefetch=0,
            grid=(B, n_par, n_inner),
            in_specs=[pl.BlockSpec((None, Cf, thw), x_map1) for _ in range(height)],
            out_specs=pl.BlockSpec((None, None, Cf, 1), lambda b, p, t: (b, p, 0, 0)),
        ),
        compiler_params=pltpu.CompilerParams(
            dimension_semantics=("parallel", "parallel", "arbitrary"),
            vmem_limit_bytes=vmem_limit),
    )(*xs)

    # ---------------- squeeze path: tiny, batched over B in plain JAX -------
    pooled = jnp.sum(pooled[..., 0], axis=1)                      # (B, Cf)
    if s_fold > 1:
        pooled = pooled.reshape(B, C, s_fold).sum(axis=-1)        # (B, C)
    # fold the 1/HW average-pool scale into the conv_du weight
    w_du2 = w_du.reshape(d, C).astype(jnp.float32) / jnp.float32(HW)
    z = pooled @ w_du2.T                                          # (B, d)
    z = jnp.where(z >= 0, z, NEG_SLOPE * z)                       # LeakyReLU(0.2)
    # all per-branch fc weights fused into one matmul
    w_fc = jnp.concatenate([w.reshape(C, d) for w in w_fcs],
                           axis=0).astype(jnp.float32)            # (h*C, d)
    logits = (z @ w_fc.T).reshape(B, height, C)                   # (B, h, C)
    attn = jax.nn.softmax(logits, axis=1)                         # f32, over branches
    if s_fold > 1:
        attn = jnp.repeat(attn, s_fold, axis=2)                   # (B, h, Cf)
    attn = attn[..., None]                                        # (B, h, Cf, 1) f32

    # ---------------- pass 2: streaming weighted sum, tile-by-tile ----------
    out = pl.pallas_call(
        _make_weighted_sum_kernel(height),
        out_shape=jax.ShapeDtypeStruct((B, Cf, hw_pad), x_dtype),
        grid_spec=pltpu.PrefetchScalarGridSpec(
            num_scalar_prefetch=0,
            grid=(B, n_tiles),
            in_specs=[pl.BlockSpec((None, height, Cf, 1), lambda b, t: (b, 0, 0, 0))]
                     + [pl.BlockSpec((None, Cf, thw), lambda b, t: (b, 0, t))
                        for _ in range(height)],
            out_specs=pl.BlockSpec((None, Cf, thw), lambda b, t: (b, 0, t)),
        ),
        compiler_params=pltpu.CompilerParams(
            dimension_semantics=("parallel", "parallel"),
            vmem_limit_bytes=vmem_limit),
    )(attn, *xs)

    if hw_pad != hw_f:
        out = out[:, :, :hw_f]
    return out.reshape(B, C, H, W)


def skff_reference(inp_feats, w_du, w_fcs):
    """Pure-JAX reference mirroring the PyTorch module (for verification)."""
    x = jnp.stack(inp_feats, axis=1)                              # [B, h, C, H, W]
    u = jnp.sum(x, axis=1)                                        # [B, C, H, W]
    s = jnp.mean(u, axis=(2, 3))                                  # [B, C]
    d, C = w_du.shape[0], w_du.shape[1]
    z = s @ w_du.reshape(d, C).T                                  # [B, d]
    z = jnp.where(z >= 0, z, NEG_SLOPE * z)
    att = jnp.stack([z @ w.reshape(C, d).T for w in w_fcs], axis=1)  # [B, h, C]
    att = jax.nn.softmax(att, axis=1)
    return jnp.sum(x * att[:, :, :, None, None], axis=1)          # [B, C, H, W]


if __name__ == "__main__":
    height, reduction = 2, 8

    def run_case(B, C, H, W, seed):
        d = max(int(C / reduction), 4)
        key = jax.random.PRNGKey(seed)
        ks = jax.random.split(key, 3 + height)
        feats = [jax.random.normal(ks[i], (B, C, H, W), jnp.float32)
                 for i in range(height)]
        w_du = jax.random.normal(ks[height], (d, C, 1, 1), jnp.float32) * 0.1
        w_fcs = [jax.random.normal(ks[height + 1 + i], (C, d, 1, 1), jnp.float32) * 0.1
                 for i in range(height)]
        out = jax.block_until_ready(skff_forward(feats, w_du, w_fcs))
        ref = skff_reference(feats, w_du, w_fcs)
        np.testing.assert_allclose(np.asarray(out), np.asarray(ref),
                                   atol=1e-5, rtol=1e-5)

    # main case (module-consistent small shapes)
    run_case(B=2, C=4, H=16, W=16, seed=0)
    # non-128-divisible spatial extent exercises the zero-pad path
    run_case(B=2, C=4, H=10, W=10, seed=1)

    print("KERNEL_OK")
</pallas_src>

<mosaic_0001>
module attributes {stable_mosaic.version = 11 : i64} {
  func.func @kernel(%arg0: i32, %arg1: i32, %arg2: i32, %arg3: memref<1x8x128xf32, #tpu.memory_space<vmem>>, %arg4: memref<1x8x128xf32, #tpu.memory_space<vmem>>, %arg5: memref<1x1x8x1xf32, #tpu.memory_space<vmem>>) attributes {dimension_semantics = [#tpu.dimension_semantics<parallel>, #tpu.dimension_semantics<parallel>, #tpu.dimension_semantics<arbitrary>], iteration_bounds = array<i64: 2, 1, 1>, scalar_prefetch = 0 : i64, scratch_operands = 0 : i64, tpu.core_type = #tpu.core_type<tc>, window_params = [{transform_indices = @transform_0, window_bounds = array<i64: 1, 8, 128>}, {transform_indices = @transform_1, window_bounds = array<i64: 1, 8, 128>}, {transform_indices = @transform_2, window_bounds = array<i64: 1, 1, 8, 1>}]} {
    %c0 = arith.constant 0 : index
    %c0_0 = arith.constant 0 : index
    %c0_1 = arith.constant 0 : index
    %0 = vector.load %arg3[%c0, %c0_0, %c0_1] : memref<1x8x128xf32, #tpu.memory_space<vmem>>, vector<1x8x128xf32>
    %1 = vector.shape_cast %0 : vector<1x8x128xf32> to vector<8x128xf32>
    %c0_2 = arith.constant 0 : index
    %c0_3 = arith.constant 0 : index
    %c0_4 = arith.constant 0 : index
    %2 = vector.load %arg4[%c0_2, %c0_3, %c0_4] : memref<1x8x128xf32, #tpu.memory_space<vmem>>, vector<1x8x128xf32>
    %3 = vector.shape_cast %2 : vector<1x8x128xf32> to vector<8x128xf32>
    %4 = arith.addf %1, %3 : vector<8x128xf32>
    %cst = arith.constant dense<0.000000e+00> : vector<8xf32>
    %5 = vector.multi_reduction <add>, %4, %cst [1] : vector<8x128xf32> to vector<8xf32>
    %6 = vector.shape_cast %5 : vector<8xf32> to vector<8x1xf32>
    %c0_i32 = arith.constant 0 : i32
    %7 = arith.cmpi eq, %arg2, %c0_i32 : i32
    %8 = arith.extui %7 : i1 to i32
    %c0_i32_5 = arith.constant 0 : i32
    %9 = arith.cmpi ne, %8, %c0_i32_5 : i32
    scf.if %9 {
      %c0_8 = arith.constant 0 : index
      %c0_9 = arith.constant 0 : index
      %c0_10 = arith.constant 0 : index
      %c0_11 = arith.constant 0 : index
      %13 = vector.load %arg5[%c0_8, %c0_9, %c0_10, %c0_11] : memref<1x1x8x1xf32, #tpu.memory_space<vmem>>, vector<1x1x8x1xf32>
      %14 = vector.shape_cast %13 : vector<1x1x8x1xf32> to vector<8x1xf32>
      %15 = vector.shape_cast %6 : vector<8x1xf32> to vector<1x1x8x1xf32>
      tpu.vector_store %arg5[%c0_8, %c0_9, %c0_10, %c0_11], %15 {strides = array<i32>} : memref<1x1x8x1xf32, #tpu.memory_space<vmem>>, vector<1x1x8x1xf32>,
    } else {
    }
    %c0_i32_6 = arith.constant 0 : i32
    %10 = arith.cmpi ne, %arg2, %c0_i32_6 : i32
    %11 = arith.extui %10 : i1 to i32
    %c0_i32_7 = arith.constant 0 : i32
    %12 = arith.cmpi ne, %11, %c0_i32_7 : i32
    scf.if %12 {
      %c0_8 = arith.constant 0 : index
      %c0_9 = arith.constant 0 : index
      %c0_10 = arith.constant 0 : index
      %c0_11 = arith.constant 0 : index
      %13 = vector.load %arg5[%c0_8, %c0_9, %c0_10, %c0_11] : memref<1x1x8x1xf32, #tpu.memory_space<vmem>>, vector<1x1x8x1xf32>
      %14 = vector.shape_cast %13 : vector<1x1x8x1xf32> to vector<8x1xf32>
      %15 = arith.addf %14, %6 : vector<8x1xf32>
      %c0_12 = arith.constant 0 : index
      %c0_13 = arith.constant 0 : index
      %c0_14 = arith.constant 0 : index
      %c0_15 = arith.constant 0 : index
      %16 = vector.load %arg5[%c0_12, %c0_13, %c0_14, %c0_15] : memref<1x1x8x1xf32, #tpu.memory_space<vmem>>, vector<1x1x8x1xf32>
      %17 = vector.shape_cast %16 : vector<1x1x8x1xf32> to vector<8x1xf32>
      %18 = vector.shape_cast %15 : vector<8x1xf32> to vector<1x1x8x1xf32>
      tpu.vector_store %arg5[%c0_12, %c0_13, %c0_14, %c0_15], %18 {strides = array<i32>} : memref<1x1x8x1xf32, #tpu.memory_space<vmem>>, vector<1x1x8x1xf32>,
    } else {
    }
    return
  }
  func.func @transform_0(%arg0: i32, %arg1: i32, %arg2: i32) -> (i32, i32, i32) {
    %c1_i32 = arith.constant 1 : i32
    %0 = arith.muli %arg1, %c1_i32 : i32
    %1 = arith.addi %0, %arg2 : i32
    %c0_i32 = arith.constant 0 : i32
    %c0_i32_0 = arith.constant 0 : i32
    return %arg0, %c0_i32, %1 : i32, i32, i32
  }
  func.func @transform_1(%arg0: i32, %arg1: i32, %arg2: i32) -> (i32, i32, i32) {
    %c1_i32 = arith.constant 1 : i32
    %0 = arith.muli %arg1, %c1_i32 : i32
    %1 = arith.addi %0, %arg2 : i32
    %c0_i32 = arith.constant 0 : i32
    %c0_i32_0 = arith.constant 0 : i32
    return %arg0, %c0_i32, %1 : i32, i32, i32
  }
  func.func @transform_2(%arg0: i32, %arg1: i32, %arg2: i32) -> (i32, i32, i32, i32) {
    %c0_i32 = arith.constant 0 : i32
    %c0_i32_0 = arith.constant 0 : i32
    %c0_i32_1 = arith.constant 0 : i32
    return %arg0, %arg1, %c0_i32, %c0_i32_0 : i32, i32, i32, i32
  }
}

</mosaic_0001>

<llo_original>
// kernel: tpu_custom_call.1
$region0: #{tpu_custom_call.1}
  #allocation0 [shape = 'u32[]', space=smem, size = 0x4, offset = 0x4, fixed_abs, tag = 'smem constant byte address 0x4 - core index']
  #allocation1 [shape = 'u32[144,128]{1,0:T(1,128)}', space=vmem, size = 0x12000, scoped, tag = 'internal scratch']
  %s0 = inlined_call_operand.hbm [shape: f32[2,8,128], index: 0, kind: input, shape index: {}]
  %s1 = inlined_call_operand.hbm [shape: f32[2,8,128], index: 1, kind: input, shape index: {}]
  %s2 = inlined_call_operand.vmem [shape: f32[2,1,8,1], index: 2, kind: output, shape index: {}]
  %s3 = sld [smem:[#allocation0]]
  $region57: #{tpu_custom_call.1} parent=0
    _
  %s5 = ssub.s32 1, %s3
  %s6 = scalar_select 0, %s5, %s3
  $region1: #{tpu_custom_call.1} parent=0
    #allocation2 [shape = 'u8[8192]{0}', space=vmem, size = 0x2000, scoped, tag = 'input window, operand 0']
    #allocation3 [shape = 's32[2]{0}', space=sflag, size = 0x8, scoped, tag = 'scoped memory for tpu_custom_call.1']
    #allocation4 [shape = 'u8[8192]{0}', space=vmem, size = 0x2000, scoped, tag = 'input window, operand 1']
    #allocation5 [shape = 's32[2]{0}', space=sflag, size = 0x8, scoped, tag = 'scoped memory for tpu_custom_call.1']
    %7 = vsyncpa [#allocation3], 0
    %s8 = scalar_lea.sflag [#allocation3], 1
    %9 = vsyncpa %s8, 0
    %10 = vsyncpa [#allocation5], 0
    %s11 = scalar_lea.sflag [#allocation5], 1
    %12 = vsyncpa %s11, 0
    loop: start=0, step=1, limit=4
    $region2: #{tpu_custom_call.1} parent=1 // loop_pre_header
      _
    $region3: #{tpu_custom_call.1} parent=1 // loop_header
      %s14 = sphi 0, %s18
      %p15 = scmp.ge.s32.totalorder %s14, 4
      %s21 = sphi 0, %s40
      %s22 = sphi 0, %s36
      %s23 = sphi 0, %s32
      %s24 = sphi 0, %s21
      %s25 = sphi 0, %s22
      %s26 = sphi 0, %s23
      %s27 = sphi 0, %s24
      %s28 = sphi 0, %s25
      %s29 = sphi 0, %s26
      %s47 = sphi 0, %s49
      %s50 = sphi 0, %s47
      %s51 = sphi 0, %s50
      %s67 = sphi 0, %s51
      %s77 = sphi 0, %s79
      %s80 = sphi 0, %s77
      %s81 = sphi 0, %s80
      %s97 = sphi 0, %s81
      %s105 = sphi 0, %s107
      %s108 = sphi 0, %s105
      %s109 = sphi 0, %s108
      %s125 = sphi 0, %s109
    $region4: #{tpu_custom_call.1} parent=1 // loop_header_branch
      %17 = sbr.rel (%p15) target = $region8
    $region5: #{tpu_custom_call.1} parent=1 // loop_body
      %s19 = ssub.s32 %s14, 1
      %s20 = ssub.s32 %s14, 2
      %s30 = sadd.s32 1, %s23
      %p31 = scmp.ge.s32.totalorder %s30, 1
      %s32 = scalar_select %p31, 0, %s30
      %s33 = sadd.s32 1, %s22
      %s34 = scalar_select %p31, %s33, %s22
      %p35 = scmp.ge.s32.totalorder %s34, 1
      %s36 = scalar_select %p35, 0, %s34
      %s37 = sadd.s32 1, %s21
      %s38 = scalar_select %p35, %s37, %s21
      %p39 = scmp.ge.s32.totalorder %s38, 2
      %s40 = scalar_select %p39, 0, %s38
      %s41 = sadd.s32 %s22, %s23
      %s42 = sadd.s32 %s36, %s32
      %s43 = ssub.s32 %s21, %s40
      %s44 = ssub.s32 %s41, %s42
      %s45 = sor.u32 %s43, %s44
      %p46 = scmp.eq.s32.totalorder %s45, 0
      %s48 = sadd.s32 %s47, 1
      %s49 = scalar_select %p46, %s47, %s48
      %p52 = pneg %p46
      %p53 = scmp.eq.s32.totalorder %s14, 1
      %p54 = por %p52, %p53
      %p55 = scmp.ne.s32.totalorder %s47, %s50
      %p56 = scmp.eq.s32.totalorder %s14, 0
      %p57 = por %p55, %p56
      %p58 = scmp.ne.s32.totalorder %s47, %s50
      %p59 = scmp.eq.s32.totalorder %s19, 1
      %p60 = por %p58, %p59
      %p61 = scmp.ne.s32.totalorder %s50, %s51
      %p62 = scmp.eq.s32.totalorder %s19, 0
      %p63 = por %p61, %p62
      %p64 = scmp.ne.s32.totalorder %s50, %s51
      %p65 = scmp.eq.s32.totalorder %s20, 1
      %p66 = por %p64, %p65
      %p68 = scmp.ne.s32.totalorder %s51, %s67
      %p69 = scmp.eq.s32.totalorder %s20, 0
      %p70 = por %p68, %p69
      %s71 = sadd.s32 %s22, %s23
      %s72 = sadd.s32 %s36, %s32
      %s73 = ssub.s32 %s21, %s40
      %s74 = ssub.s32 %s71, %s72
      %s75 = sor.u32 %s73, %s74
      %p76 = scmp.eq.s32.totalorder %s75, 0
      %s78 = sadd.s32 %s77, 1
      %s79 = scalar_select %p76, %s77, %s78
      %p82 = pneg %p76
      %p83 = scmp.eq.s32.totalorder %s14, 1
      %p84 = por %p82, %p83
      %p85 = scmp.ne.s32.totalorder %s77, %s80
      %p86 = scmp.eq.s32.totalorder %s14, 0
      %p87 = por %p85, %p86
      %p88 = scmp.ne.s32.totalorder %s77, %s80
      %p89 = scmp.eq.s32.totalorder %s19, 1
      %p90 = por %p88, %p89
      %p91 = scmp.ne.s32.totalorder %s80, %s81
      %p92 = scmp.eq.s32.totalorder %s19, 0
      %p93 = por %p91, %p92
      %p94 = scmp.ne.s32.totalorder %s80, %s81
      %p95 = scmp.eq.s32.totalorder %s20, 1
      %p96 = por %p94, %p95
      %p98 = scmp.ne.s32.totalorder %s81, %s97
      %p99 = scmp.eq.s32.totalorder %s20, 0
      %p100 = por %p98, %p99
      %s101 = ssub.s32 %s21, %s40
      %s102 = ssub.s32 %s22, %s36
      %s103 = sor.u32 %s101, %s102
      %p104 = scmp.eq.s32.totalorder %s103, 0
      %s106 = sadd.s32 %s105, 1
      %s107 = scalar_select %p104, %s105, %s106
      %p110 = pneg %p104
      %p111 = scmp.eq.s32.totalorder %s14, 1
      %p112 = por %p110, %p111
      %p113 = scmp.ne.s32.totalorder %s105, %s108
      %p114 = scmp.eq.s32.totalorder %s14, 0
      %p115 = por %p113, %p114
      %p116 = scmp.ne.s32.totalorder %s105, %s108
      %p117 = scmp.eq.s32.totalorder %s19, 1
      %p118 = por %p116, %p117
      %p119 = scmp.ne.s32.totalorder %s108, %s109
      %p120 = scmp.eq.s32.totalorder %s19, 0
      %p121 = por %p119, %p120
      %p122 = scmp.ne.s32.totalorder %s108, %s109
      %p123 = scmp.eq.s32.totalorder %s20, 1
      %p124 = por %p122, %p123
      %p126 = scmp.ne.s32.totalorder %s109, %s125
      %p127 = scmp.eq.s32.totalorder %s20, 0
      %p128 = por %p126, %p127
      %p129 = scmp.le.s32.totalorder 1, %s14
      %p130 = scmp.lt.s32.totalorder %s14, 3
      %p131 = pnand %p129, %p130
      %p132 = pneg %p131
      // Predicated region
      $region9: #{tpu_custom_call.1} parent=5 // pred_check
        _
      $region10: #{tpu_custom_call.1} parent=5 // pred_check_branch
        %134 = sbr.rel (%p131) target = $region12
      $region11: #{tpu_custom_call.1} parent=5 // pred_region
        %s135 = ssub.s32 %s14, 1
      $region12: #{tpu_custom_call.1} parent=5 // pred_fallthru
        _
      %p136 = scmp.lt.s32.totalorder %s14, 2
      // Predicated region
      $region13: #{tpu_custom_call.1} parent=5 // pred_check
        %p137 = pneg %p136
      $region14: #{tpu_custom_call.1} parent=5 // pred_check_branch
        %139 = sbr.rel (%p137) target = $region16
      $region15: #{tpu_custom_call.1} parent=5 // pred_region
        // Predicated region
        $region17: #{tpu_custom_call.1} parent=15 // pred_check
          %p140 = pneg %p57
        $region18: #{tpu_custom_call.1} parent=15 // pred_check_branch
          %142 = sbr.rel (%p140) target = $region20
        $region19: #{tpu_custom_call.1} parent=15 // pred_region
          %s143 = sand.u32 %s47, 1
          %s144 = scalar_lea.sflag [#allocation3], %s143
          %s145 = sand.u32 %s47, 1
          %s146 = smul.addr %s145, 8
          %s147 = scalar_lea.vmem [#allocation2], %s146
          %s148 = sadd.s32 %s22, %s23
          %s150 = ssub.s32 128, 128
          %151 = vsyncadd %s144, %s150
          %s152 = sadd.s32 %s148, %s21
          %s153 = smul.addr %s152, 128
          %s154 = scalar_lea.hbm %s0, %s153
          %s156 = sshll.u32 %s147, 4
          %s157 = int_to_ptr.vmem [resolvable:$true] %s156
          %159 = dma.hbm_to_vmem [thread:$0]  %s154, 128, %s157, %s144
        $region20: #{tpu_custom_call.1} parent=15 // pred_fallthru
          _
        // Predicated region
        $region21: #{tpu_custom_call.1} parent=15 // pred_check
          %p160 = pneg %p87
        $region22: #{tpu_custom_call.1} parent=15 // pred_check_branch
          %162 = sbr.rel (%p160) target = $region24
        $region23: #{tpu_custom_call.1} parent=15 // pred_region
          %s163 = sand.u32 %s77, 1
          %s164 = scalar_lea.sflag [#allocation5], %s163
          %s165 = sand.u32 %s77, 1
          %s166 = smul.addr %s165, 8
          %s167 = scalar_lea.vmem [#allocation4], %s166
          %s168 = sadd.s32 %s22, %s23
          %s170 = ssub.s32 128, 128
          %171 = vsyncadd %s164, %s170
          %s172 = sadd.s32 %s168, %s21
          %s173 = smul.addr %s172, 128
          %s174 = scalar_lea.hbm %s1, %s173
          %s176 = sshll.u32 %s167, 4
          %s177 = int_to_ptr.vmem [resolvable:$true] %s176
          %179 = dma.hbm_to_vmem [thread:$0]  %s174, 128, %s177, %s164
        $region24: #{tpu_custom_call.1} parent=15 // pred_fallthru
          _
      $region16: #{tpu_custom_call.1} parent=5 // pred_fallthru
        _
      %p180 = scmp.le.s32.totalorder 1, %s14
      %p181 = scmp.lt.s32.totalorder %s14, 3
      %p182 = pnand %p180, %p181
      %p183 = pneg %p182
      // Predicated region
      $region25: #{tpu_custom_call.1} parent=5 // pred_check
        _
      $region26: #{tpu_custom_call.1} parent=5 // pred_check_branch
        %185 = sbr.rel (%p182) target = $region28
      $region27: #{tpu_custom_call.1} parent=5 // pred_region
        %s186 = ssub.s32 %s14, 1
        %s187 = sand.u32 %s50, 1
        %s188 = scalar_lea.sflag [#allocation3], %s187
        %s189 = sand.u32 %s50, 1
        %s190 = smul.addr %s189, 8
        %s191 = scalar_lea.vmem [#allocation2], %s190
        // Predicated region
        $region29: #{tpu_custom_call.1} parent=27 // pred_check
          %p192 = pneg %p63
        $region30: #{tpu_custom_call.1} parent=27 // pred_check_branch
          %194 = sbr.rel (%p192) target = $region32
        $region31: #{tpu_custom_call.1} parent=27 // pred_region
          %195 = dma.done %s188, 128
        $region32: #{tpu_custom_call.1} parent=27 // pred_fallthru
          _
        %s196 = sand.u32 %s80, 1
        %s197 = scalar_lea.sflag [#allocation5], %s196
        %s198 = sand.u32 %s80, 1
        %s199 = smul.addr %s198, 8
        %s200 = scalar_lea.vmem [#allocation4], %s199
        // Predicated region
        $region33: #{tpu_custom_call.1} parent=27 // pred_check
          %p201 = pneg %p93
        $region34: #{tpu_custom_call.1} parent=27 // pred_check_branch
          %203 = sbr.rel (%p201) target = $region36
        $region35: #{tpu_custom_call.1} parent=27 // pred_region
          %204 = dma.done %s197, 128
        $region36: #{tpu_custom_call.1} parent=27 // pred_fallthru
          _
        %s205 = sand.u32 %s50, 1
        %s206 = scalar_lea.sflag [#allocation3], %s205
        %s207 = sand.u32 %s50, 1
        %s208 = smul.addr %s207, 8
        %s209 = scalar_lea.vmem [#allocation2], %s208
        %p210 = pneg %p63
        %p211 = pneg %p60
        %s212 = sand.u32 %s80, 1
        %s213 = scalar_lea.sflag [#allocation5], %s212
        %s214 = sand.u32 %s80, 1
        %s215 = smul.addr %s214, 8
        %s216 = scalar_lea.vmem [#allocation4], %s215
        %p217 = pneg %p93
        %p218 = pneg %p90
        %p219 = pneg %p121
        %p220 = pneg %p118
        %p221 = scmp.lt.s32.totalorder %s24, 1
        %s222 = scalar_select %p221, %s24, 1
        %p223 = scmp.lt.s32.totalorder %s25, 0
        %s224 = scalar_select %p223, %s25, 0
        %s225 = sadd.s32 %s224, %s222
        %s226 = smul.addr %s225, 8
        %s227 = scalar_lea.vmem %s2, %s226
        %s228 = sadd.s32 %s25, %s26
        %s229 = sadd.s32 %s25, %s26
        %p230 = scmp.lt.s32.totalorder %s24, 1
        %s231 = scalar_select %p230, %s24, 1
        %p232 = scmp.lt.s32.totalorder %s25, 0
        %s233 = scalar_select %p232, %s25, 0
        %s234 = sadd.s32 %s233, %s231
        %s235 = smul.addr %s234, 8
        %s236 = scalar_lea.vmem %s2, %s235
        %v237 = vld [vmem:[%s191] sm:$0xff]
        %v238 = vld [vmem:[%s200] sm:$0xff]
        %v239 = vadd.f32 %v237, %v238
        %240 = vadd.xlane.f32.xlu0 %v239
        %v241 = vpop.xlane.xlu0 %240
        %p242 = scmp.eq.s32.totalorder %s26, 0
        // Predicated region
        $region37: #{tpu_custom_call.1} parent=27 // pred_check
          %p243 = pneg %p242
        $region38: #{tpu_custom_call.1} parent=27 // pred_check_branch
          %245 = sbr.rel (%p243) target = $region40
        $region39: #{tpu_custom_call.1} parent=27 // pred_region
          %vm246 = vcmask 7168
          %247 = vst.msk [vmem:[%s236] sm:$0xff] %vm246, %v241
        $region40: #{tpu_custom_call.1} parent=27 // pred_fallthru
          _
        %p248 = scmp.ne.s32.totalorder %s26, 0
        // Predicated region
        $region41: #{tpu_custom_call.1} parent=27 // pred_check
          %p249 = pneg %p248
        $region42: #{tpu_custom_call.1} parent=27 // pred_check_branch
          %251 = sbr.rel (%p249) target = $region44
        $region43: #{tpu_custom_call.1} parent=27 // pred_region
          %v252 = vld [vmem:[%s236] sm:$0xff]
          %v253 = vadd.f32 %v252, %v241
          %vm254 = vcmask 7168
          %255 = vst.msk [vmem:[%s236] sm:$0xff] %vm254, %v253
        $region44: #{tpu_custom_call.1} parent=27 // pred_fallthru
          _
        %p256 = scmp.lt.s32.totalorder %s24, 1
        %s257 = scalar_select %p256, %s24, 1
        %p258 = scmp.lt.s32.totalorder %s25, 0
        %s259 = scalar_select %p258, %s25, 0
        %s260 = sadd.s32 %s259, %s257
        %s261 = smul.addr %s260, 8
        %s262 = scalar_lea.vmem %s2, %s261
        // Predicated region
        $region45: #{tpu_custom_call.1} parent=27 // pred_check
          %p263 = pneg %p118
        $region46: #{tpu_custom_call.1} parent=27 // pred_check_branch
          %265 = sbr.rel (%p263) target = $region48
        $region47: #{tpu_custom_call.1} parent=27 // pred_region
          _
        $region48: #{tpu_custom_call.1} parent=27 // pred_fallthru
          _
      $region28: #{tpu_custom_call.1} parent=5 // pred_fallthru
        _
      %p266 = scmp.le.s32.totalorder 2, %s14
      // Predicated region
      $region49: #{tpu_custom_call.1} parent=5 // pred_check
        %p267 = pneg %p266
      $region50: #{tpu_custom_call.1} parent=5 // pred_check_branch
        %269 = sbr.rel (%p267) target = $region52
      $region51: #{tpu_custom_call.1} parent=5 // pred_region
        %s270 = ssub.s32 %s14, 2
        // Predicated region
        $region53: #{tpu_custom_call.1} parent=51 // pred_check
          %p271 = pneg %p124
        $region54: #{tpu_custom_call.1} parent=51 // pred_check_branch
          %273 = sbr.rel (%p271) target = $region56
        $region55: #{tpu_custom_call.1} parent=51 // pred_region
          %p274 = scmp.lt.s32.totalorder %s27, 1
          %s275 = scalar_select %p274, %s27, 1
          %p276 = scmp.lt.s32.totalorder %s28, 0
          %s277 = scalar_select %p276, %s28, 0
          %s278 = sadd.s32 %s277, %s275
          %s279 = smul.addr %s278, 8
          %s280 = scalar_lea.vmem %s2, %s279
        $region56: #{tpu_custom_call.1} parent=51 // pred_fallthru
          _
      $region52: #{tpu_custom_call.1} parent=5 // pred_fallthru
        _
    $region6: #{tpu_custom_call.1} parent=1 // loop_footer
      %s18 = sadd.s32 1, %s14
    $region7: #{tpu_custom_call.1} parent=1 // loop_footer_branch
      %13 = sbr.rel target = $region3
    $region8: #{tpu_custom_call.1} parent=1 // loop_exit
      _
    %281 = vsyncpa [#allocation3], 1
    %s282 = scalar_lea.sflag [#allocation3], 1
    %283 = vsyncpa %s282, 1
    %284 = vsyncpa [#allocation5], 1
    %s285 = scalar_lea.sflag [#allocation5], 1
    %286 = vsyncpa %s285, 1

</llo_original>
